<compile_context>
chip_gen: v5e
topology: v5e:2x2
jax: 0.10.0
libtpu: 0.0.40
codegen_flags: <defaults>
</compile_context>

<pallas_src>
import functools
import math

import jax
import jax.numpy as jnp
from jax.experimental import pallas as pl
from jax.experimental.pallas import tpu as pltpu


EPS = 1e-5
_LANES = 128


def _vmem_capacity_bytes():
    try:
        cap = getattr(pltpu.get_tpu_info(), "vmem_capacity_bytes", None)
        if cap:
            return int(cap)
    except Exception:
        pass
    return 64 * 1024 * 1024          # conservative fallback (v7x per-TensorCore)


# Scoped VMEM we ask the compiler for: ~25% headroom, never more than 96 MiB.
_VMEM_LIMIT = min(_vmem_capacity_bytes() * 3 // 4, 96 * 1024 * 1024)


def _sublane_multiple(dtype):
    # f32 -> 8, bf16 -> 16, int8/fp8 -> 32 (packed sublanes per vreg row).
    return max(8, 32 // jnp.dtype(dtype).itemsize)


def _packing_factor(c):
    """Rows packed per 128-lane row. Only when C divides 128 (packed width == 128)."""
    if c < _LANES and _LANES % c == 0:
        return _LANES // c
    return 1


def _choose_block_rows(m_rows, row_bytes, sub, block_rows):
    """Pick the per-grid-step row-tile size for an (m_rows, width) view."""
    if block_rows is not None:
        tm = min(int(block_rows), m_rows)
    else:
        tm = (2 * 1024 * 1024) // row_bytes                        # ~2 MiB x tile
        tm = min(tm, (_VMEM_LIMIT * 6 // 10) // (4 * row_bytes))   # 2 in + 2 out bufs
        tm = min(tm, pl.cdiv(m_rows, 8))                           # keep >= ~8 steps
    if tm >= m_rows:
        return m_rows                 # single full-extent tile (ragged M allowed)
    return max(sub, (tm // sub) * sub)  # multiple of the sublane count


# ----------------------------------------------------------------------------
# Kernel A: generic path — per-row reduction over the full channel dim.
# ----------------------------------------------------------------------------
def _ln_rows_kernel(x_ref, w_ref, b_ref, o_ref):
    x = x_ref[...].astype(jnp.float32)                     # (tm, C)
    mu = jnp.mean(x, axis=-1, keepdims=True)               # XLU reduce
    xc = x - mu
    var = jnp.mean(xc * xc, axis=-1, keepdims=True)        # biased (unbiased=False)
    inv = jax.lax.rsqrt(var + EPS)                         # EUP rsqrt
    o_ref[...] = (xc * inv * w_ref[...].astype(jnp.float32)
                  + b_ref[...].astype(jnp.float32)).astype(o_ref.dtype)


# ----------------------------------------------------------------------------
# Kernel B: lane-dense packed path (k rows per 128-lane row, k*C == 128).
# Segmented mean/var via a block-diagonal ones matmul on the MXU (exact f32).
# ----------------------------------------------------------------------------
def _ln_packed_kernel(x_ref, w_ref, b_ref, seg_ref, o_ref, *, inv_c):
    x = x_ref[...].astype(jnp.float32)                     # (tm, 128) lane-dense
    seg = seg_ref[...]                                     # (128, 128) block-diag ones
    mu = jnp.dot(x, seg, preferred_element_type=jnp.float32,
                 precision=jax.lax.Precision.HIGHEST) * inv_c
    xc = x - mu
    var = jnp.dot(xc * xc, seg, preferred_element_type=jnp.float32,
                  precision=jax.lax.Precision.HIGHEST) * inv_c
    inv = jax.lax.rsqrt(var + EPS)
    o_ref[...] = (xc * inv * w_ref[...].astype(jnp.float32)
                  + b_ref[...].astype(jnp.float32)).astype(o_ref.dtype)


@functools.partial(jax.jit, static_argnames=("block_rows",))
def withbias_layernorm(x, weight, bias, *, block_rows=None):
    """LayerNorm over the last dim of x, with affine weight/bias of shape (C,)."""
    orig_shape = x.shape
    c = orig_shape[-1]
    m = math.prod(orig_shape[:-1]) if len(orig_shape) > 1 else 1
    sub = _sublane_multiple(x.dtype)
    itemsize = jnp.dtype(x.dtype).itemsize

    k = _packing_factor(c)
    packed = (k > 1) and (m % k == 0)
    width = k * c if packed else c
    m_rows = m // k if packed else m

    x2 = x.reshape(m_rows, width)                  # contiguous merge — free
    tm = _choose_block_rows(m_rows, width * itemsize, sub, block_rows)
    grid = (pl.cdiv(m_rows, tm),)                  # ragged M: boundary writes masked

    if packed:
        w2 = jnp.tile(weight.reshape(1, c), (1, k))
        b2 = jnp.tile(bias.reshape(1, c), (1, k))
    else:
        w2 = weight.reshape(1, c)
        b2 = bias.reshape(1, c)

    x_spec = pl.BlockSpec((tm, width), lambda i: (i, 0))
    wb_spec = pl.BlockSpec((1, width), lambda i: (0, 0))       # resident
    out_spec = pl.BlockSpec((tm, width), lambda i: (i, 0))
    params = pltpu.CompilerParams(
        dimension_semantics=("parallel",),
        vmem_limit_bytes=int(_VMEM_LIMIT),
    )

    if packed:
        lane = jnp.arange(width, dtype=jnp.int32) // c
        seg = (lane[:, None] == lane[None, :]).astype(jnp.float32)   # (128, 128)
        out = pl.pallas_call(
            functools.partial(_ln_packed_kernel, inv_c=1.0 / c),
            out_shape=jax.ShapeDtypeStruct((m_rows, width), x.dtype),
            grid_spec=pltpu.PrefetchScalarGridSpec(
                num_scalar_prefetch=0,
                grid=grid,
                in_specs=[x_spec, wb_spec, wb_spec,
                          pl.BlockSpec((width, width), lambda i: (0, 0))],
                out_specs=out_spec,
            ),
            compiler_params=params,
        )(x2, w2, b2, seg)
    else:
        out = pl.pallas_call(
            _ln_rows_kernel,
            out_shape=jax.ShapeDtypeStruct((m_rows, width), x.dtype),
            grid_spec=pltpu.PrefetchScalarGridSpec(
                num_scalar_prefetch=0,
                grid=grid,
                in_specs=[x_spec, wb_spec, wb_spec],
                out_specs=out_spec,
            ),
            compiler_params=params,
        )(x2, w2, b2)

    return out.reshape(orig_shape)


# ----------------------------------------------------------------------------
# Pure-JAX reference (mirrors the PyTorch forward)
# ----------------------------------------------------------------------------
def reference_layernorm(x, weight, bias):
    mu = jnp.mean(x, axis=-1, keepdims=True)
    var = jnp.mean((x - mu) ** 2, axis=-1, keepdims=True)
    return (x - mu) / jnp.sqrt(var + EPS) * weight + bias


if __name__ == "__main__":
    key = jax.random.PRNGKey(0)
    kx, kw, kb, kx2, kx3 = jax.random.split(key, 5)

    # 1) Restormer-style tokens (B, H*W, C), C=32 -> lane-dense packed path,
    #    multi-step grid (exercises pipelining and the "parallel" row axis).
    B, HW, C = 2, 64, 32
    x = jax.random.normal(kx, (B, HW, C), jnp.float32)
    weight = 1.0 + 0.1 * jax.random.normal(kw, (C,), jnp.float32)
    bias = 0.1 * jax.random.normal(kb, (C,), jnp.float32)

    out = jax.block_until_ready(withbias_layernorm(x, weight, bias))
    assert out.shape == x.shape
    ref = reference_layernorm(x, weight, bias)
    assert jnp.allclose(out, ref, rtol=2e-5, atol=2e-5), float(
        jnp.max(jnp.abs(out - ref)))

    # 2) Ragged row count (M = 51, not a multiple of the tile or the packing
    #    factor) -> generic path, cdiv grid with a masked boundary block.
    x_r = jax.random.normal(kx2, (3, 17, C), jnp.float32)
    out_r = jax.block_until_ready(withbias_layernorm(x_r, weight, bias))
    ref_r = reference_layernorm(x_r, weight, bias)
    assert jnp.allclose(out_r, ref_r, rtol=2e-5, atol=2e-5), float(
        jnp.max(jnp.abs(out_r - ref_r)))

    # 3) bf16 activations, C=64 -> packed path with dtype-aware (16) sublane
    #    rounding of the row tile.
    Cb = 64
    x_b = jax.random.normal(kx3, (2, 32, Cb), jnp.float32).astype(jnp.bfloat16)
    w_b = (1.0 + 0.1 * jax.random.normal(kw, (Cb,), jnp.float32)).astype(jnp.bfloat16)
    b_b = (0.1 * jax.random.normal(kb, (Cb,), jnp.float32)).astype(jnp.bfloat16)
    out_b = jax.block_until_ready(withbias_layernorm(x_b, w_b, b_b))
    ref_b = reference_layernorm(x_b.astype(jnp.float32),
                                w_b.astype(jnp.float32),
                                b_b.astype(jnp.float32))
    assert jnp.allclose(out_b.astype(jnp.float32), ref_b, rtol=2e-2, atol=2e-2), float(
        jnp.max(jnp.abs(out_b.astype(jnp.float32) - ref_b)))

    print("KERNEL_OK")
</pallas_src>

<mosaic_0001>
module attributes {stable_mosaic.version = 11 : i64} {
  func.func @_ln_packed_kernel(%arg0: i32, %arg1: memref<8x128xf32, #tpu.memory_space<vmem>>, %arg2: memref<1x128xf32, #tpu.memory_space<vmem>>, %arg3: memref<1x128xf32, #tpu.memory_space<vmem>>, %arg4: memref<128x128xf32, #tpu.memory_space<vmem>>, %arg5: memref<8x128xf32, #tpu.memory_space<vmem>>) attributes {dimension_semantics = [#tpu.dimension_semantics<parallel>], iteration_bounds = array<i64: 4>, scalar_prefetch = 0 : i64, scratch_operands = 0 : i64, tpu.core_type = #tpu.core_type<tc>, window_params = [{transform_indices = @transform_0, window_bounds = array<i64: 8, 128>}, {pipeline_mode = #tpu.pipeline_mode<synchronous>, transform_indices = @transform_1, window_bounds = array<i64: 1, 128>}, {pipeline_mode = #tpu.pipeline_mode<synchronous>, transform_indices = @transform_2, window_bounds = array<i64: 1, 128>}, {pipeline_mode = #tpu.pipeline_mode<synchronous>, transform_indices = @transform_3, window_bounds = array<i64: 128, 128>}, {transform_indices = @transform_4, window_bounds = array<i64: 8, 128>}]} {
    %c0 = arith.constant 0 : index
    %c0_0 = arith.constant 0 : index
    %0 = vector.load %arg1[%c0, %c0_0] : memref<8x128xf32, #tpu.memory_space<vmem>>, vector<8x128xf32>
    %c0_1 = arith.constant 0 : index
    %c0_2 = arith.constant 0 : index
    %1 = vector.load %arg4[%c0_1, %c0_2] : memref<128x128xf32, #tpu.memory_space<vmem>>, vector<128x128xf32>
    %cst = arith.constant dense<0.000000e+00> : vector<8x128xf32>
    %2 = tpu.matmul %0, %1, %cst {dimension_numbers = #tpu.dot_dimension_numbers<[1], [0], [0], [1], [0, 0, 1, 1], [], []>, precision = #tpu.contract_precision<fp32>} : vector<8x128xf32>, vector<128x128xf32>, vector<8x128xf32> -> vector<8x128xf32>
    %cst_3 = arith.constant 3.125000e-02 : f32
    %3 = vector.broadcast %cst_3 : f32 to vector<8x128xf32>
    %4 = arith.mulf %2, %3 : vector<8x128xf32>
    %5 = arith.subf %0, %4 : vector<8x128xf32>
    %6 = arith.mulf %5, %5 : vector<8x128xf32>
    %cst_4 = arith.constant dense<0.000000e+00> : vector<8x128xf32>
    %7 = tpu.matmul %6, %1, %cst_4 {dimension_numbers = #tpu.dot_dimension_numbers<[1], [0], [0], [1], [0, 0, 1, 1], [], []>, precision = #tpu.contract_precision<fp32>} : vector<8x128xf32>, vector<128x128xf32>, vector<8x128xf32> -> vector<8x128xf32>
    %cst_5 = arith.constant 3.125000e-02 : f32
    %8 = vector.broadcast %cst_5 : f32 to vector<8x128xf32>
    %9 = arith.mulf %7, %8 : vector<8x128xf32>
    %cst_6 = arith.constant 9.99999974E-6 : f32
    %10 = vector.broadcast %cst_6 : f32 to vector<8x128xf32>
    %11 = arith.addf %9, %10 : vector<8x128xf32>
    %12 = math.rsqrt %11 : vector<8x128xf32>
    %13 = arith.mulf %5, %12 : vector<8x128xf32>
    %c0_7 = arith.constant 0 : index
    %c0_8 = arith.constant 0 : index
    %14 = vector.load %arg2[%c0_7, %c0_8] : memref<1x128xf32, #tpu.memory_space<vmem>>, vector<1x128xf32>
    %15 = vector.broadcast %14 : vector<1x128xf32> to vector<8x128xf32>
    %16 = arith.mulf %13, %15 : vector<8x128xf32>
    %c0_9 = arith.constant 0 : index
    %c0_10 = arith.constant 0 : index
    %17 = vector.load %arg3[%c0_9, %c0_10] : memref<1x128xf32, #tpu.memory_space<vmem>>, vector<1x128xf32>
    %18 = vector.broadcast %17 : vector<1x128xf32> to vector<8x128xf32>
    %19 = arith.addf %16, %18 : vector<8x128xf32>
    %c0_11 = arith.constant 0 : index
    %c0_12 = arith.constant 0 : index
    %20 = vector.load %arg5[%c0_11, %c0_12] : memref<8x128xf32, #tpu.memory_space<vmem>>, vector<8x128xf32>
    tpu.vector_store %arg5[%c0_11, %c0_12], %19 {strides = array<i32>} : memref<8x128xf32, #tpu.memory_space<vmem>>, vector<8x128xf32>,
    return
  }
  func.func @transform_0(%arg0: i32) -> (i32, i32) {
    %c0_i32 = arith.constant 0 : i32
    %c0_i32_0 = arith.constant 0 : i32
    return %arg0, %c0_i32 : i32, i32
  }
  func.func @transform_1(%arg0: i32) -> (i32, i32) {
    %c0_i32 = arith.constant 0 : i32
    %c0_i32_0 = arith.constant 0 : i32
    %c0_i32_1 = arith.constant 0 : i32
    return %c0_i32, %c0_i32_0 : i32, i32
  }
  func.func @transform_2(%arg0: i32) -> (i32, i32) {
    %c0_i32 = arith.constant 0 : i32
    %c0_i32_0 = arith.constant 0 : i32
    %c0_i32_1 = arith.constant 0 : i32
    return %c0_i32, %c0_i32_0 : i32, i32
  }
  func.func @transform_3(%arg0: i32) -> (i32, i32) {
    %c0_i32 = arith.constant 0 : i32
    %c0_i32_0 = arith.constant 0 : i32
    %c0_i32_1 = arith.constant 0 : i32
    return %c0_i32, %c0_i32_0 : i32, i32
  }
  func.func @transform_4(%arg0: i32) -> (i32, i32) {
    %c0_i32 = arith.constant 0 : i32
    %c0_i32_0 = arith.constant 0 : i32
    return %arg0, %c0_i32 : i32, i32
  }
}

</mosaic_0001>

<llo_original>
// kernel: withbias_layernorm.1
$region0: #{withbias_layernorm.1}
  #allocation0 [shape = 'u32[]', space=smem, size = 0x4, offset = 0x4, fixed_abs, tag = 'smem constant byte address 0x4 - core index']
  #allocation1 [shape = 'u32[72,128]{1,0:T(1,128)}', space=vmem, size = 0x9000, scoped, tag = 'internal scratch']
  %s0 = inlined_call_operand.vmem [shape: f32[32,128], index: 0, kind: input, shape index: {}]
  %s1 = inlined_call_operand.vmem [shape: f32[1,128], index: 1, kind: input, shape index: {}]
  %s2 = inlined_call_operand.vmem [shape: f32[1,128], index: 2, kind: input, shape index: {}]
  %s3 = inlined_call_operand.vmem [shape: f32[128,128], index: 3, kind: input, shape index: {}]
  %s4 = inlined_call_operand.vmem [shape: f32[32,128], index: 4, kind: output, shape index: {}]
  %s5 = sld [smem:[#allocation0]]
  $region49: #{withbias_layernorm.1} parent=0
    _
  %s7 = ssub.s32 1, %s5
  %s8 = scalar_select 0, %s7, %s5
  loop: start=0, step=1, limit=6
  $region2: #{withbias_layernorm.1} parent=0 // loop_pre_header
    _
  $region3: #{withbias_layernorm.1} parent=0 // loop_header
    %s10 = sphi 0, %s14
    %p11 = scmp.ge.s32.totalorder %s10, 6
    %s20 = sphi 0, %s22
    %s23 = sphi 0, %s20
    %s24 = sphi 0, %s23
    %s40 = sphi 0, %s24
    %s44 = sphi 0, %s44
    %s46 = sphi 0, %s44
    %s47 = sphi 0, %s46
    %s61 = sphi 0, %s47
    %s65 = sphi 0, %s65
    %s67 = sphi 0, %s65
    %s68 = sphi 0, %s67
    %s82 = sphi 0, %s68
    %s86 = sphi 0, %s86
    %s88 = sphi 0, %s86
    %s89 = sphi 0, %s88
    %s103 = sphi 0, %s89
    %s109 = sphi 0, %s111
    %s112 = sphi 0, %s109
    %s113 = sphi 0, %s112
    %s129 = sphi 0, %s113
  $region4: #{withbias_layernorm.1} parent=0 // loop_header_branch
    %13 = sbr.rel (%p11) target = $region8
  $region5: #{withbias_layernorm.1} parent=0 // loop_body
    %s15 = ssub.s32 %s10, 1
    %s16 = ssub.s32 %s10, 2
    %s17 = sadd.s32 %s10, 1
    %s18 = ssub.s32 %s10, %s17
    %p19 = scmp.eq.s32.totalorder %s18, 0
    %s21 = sadd.s32 %s20, 1
    %s22 = scalar_select %p19, %s20, %s21
    %p25 = pneg %p19
    %p26 = scmp.eq.s32.totalorder %s10, 3
    %p27 = por %p25, %p26
    %p28 = scmp.ne.s32.totalorder %s20, %s23
    %p29 = scmp.eq.s32.totalorder %s10, 0
    %p30 = por %p28, %p29
    %p31 = scmp.ne.s32.totalorder %s20, %s23
    %p32 = scmp.eq.s32.totalorder %s15, 3
    %p33 = por %p31, %p32
    %p34 = scmp.ne.s32.totalorder %s23, %s24
    %p35 = scmp.eq.s32.totalorder %s15, 0
    %p36 = por %p34, %p35
    %p37 = scmp.ne.s32.totalorder %s23, %s24
    %p38 = scmp.eq.s32.totalorder %s16, 3
    %p39 = por %p37, %p38
    %p41 = scmp.ne.s32.totalorder %s24, %s40
    %p42 = scmp.eq.s32.totalorder %s16, 0
    %p43 = por %p41, %p42
    %s45 = sadd.s32 %s44, 1
    %p48 = scmp.eq.s32.totalorder %s10, 3
    %p49 = scmp.ne.s32.totalorder %s44, %s46
    %p50 = scmp.eq.s32.totalorder %s10, 0
    %p51 = por %p49, %p50
    %p52 = scmp.ne.s32.totalorder %s44, %s46
    %p53 = scmp.eq.s32.totalorder %s15, 3
    %p54 = por %p52, %p53
    %p55 = scmp.ne.s32.totalorder %s46, %s47
    %p56 = scmp.eq.s32.totalorder %s15, 0
    %p57 = por %p55, %p56
    %p58 = scmp.ne.s32.totalorder %s46, %s47
    %p59 = scmp.eq.s32.totalorder %s16, 3
    %p60 = por %p58, %p59
    %p62 = scmp.ne.s32.totalorder %s47, %s61
    %p63 = scmp.eq.s32.totalorder %s16, 0
    %p64 = por %p62, %p63
    %s66 = sadd.s32 %s65, 1
    %p69 = scmp.eq.s32.totalorder %s10, 3
    %p70 = scmp.ne.s32.totalorder %s65, %s67
    %p71 = scmp.eq.s32.totalorder %s10, 0
    %p72 = por %p70, %p71
    %p73 = scmp.ne.s32.totalorder %s65, %s67
    %p74 = scmp.eq.s32.totalorder %s15, 3
    %p75 = por %p73, %p74
    %p76 = scmp.ne.s32.totalorder %s67, %s68
    %p77 = scmp.eq.s32.totalorder %s15, 0
    %p78 = por %p76, %p77
    %p79 = scmp.ne.s32.totalorder %s67, %s68
    %p80 = scmp.eq.s32.totalorder %s16, 3
    %p81 = por %p79, %p80
    %p83 = scmp.ne.s32.totalorder %s68, %s82
    %p84 = scmp.eq.s32.totalorder %s16, 0
    %p85 = por %p83, %p84
    %s87 = sadd.s32 %s86, 1
    %p90 = scmp.eq.s32.totalorder %s10, 3
    %p91 = scmp.ne.s32.totalorder %s86, %s88
    %p92 = scmp.eq.s32.totalorder %s10, 0
    %p93 = por %p91, %p92
    %p94 = scmp.ne.s32.totalorder %s86, %s88
    %p95 = scmp.eq.s32.totalorder %s15, 3
    %p96 = por %p94, %p95
    %p97 = scmp.ne.s32.totalorder %s88, %s89
    %p98 = scmp.eq.s32.totalorder %s15, 0
    %p99 = por %p97, %p98
    %p100 = scmp.ne.s32.totalorder %s88, %s89
    %p101 = scmp.eq.s32.totalorder %s16, 3
    %p102 = por %p100, %p101
    %p104 = scmp.ne.s32.totalorder %s89, %s103
    %p105 = scmp.eq.s32.totalorder %s16, 0
    %p106 = por %p104, %p105
    %s107 = ssub.s32 %s10, %s17
    %p108 = scmp.eq.s32.totalorder %s107, 0
    %s110 = sadd.s32 %s109, 1
    %s111 = scalar_select %p108, %s109, %s110
    %p114 = pneg %p108
    %p115 = scmp.eq.s32.totalorder %s10, 3
    %p116 = por %p114, %p115
    %p117 = scmp.ne.s32.totalorder %s109, %s112
    %p118 = scmp.eq.s32.totalorder %s10, 0
    %p119 = por %p117, %p118
    %p120 = scmp.ne.s32.totalorder %s109, %s112
    %p121 = scmp.eq.s32.totalorder %s15, 3
    %p122 = por %p120, %p121
    %p123 = scmp.ne.s32.totalorder %s112, %s113
    %p124 = scmp.eq.s32.totalorder %s15, 0
    %p125 = por %p123, %p124
    %p126 = scmp.ne.s32.totalorder %s112, %s113
    %p127 = scmp.eq.s32.totalorder %s16, 3
    %p128 = por %p126, %p127
    %p130 = scmp.ne.s32.totalorder %s113, %s129
    %p131 = scmp.eq.s32.totalorder %s16, 0
    %p132 = por %p130, %p131
    %p133 = scmp.le.s32.totalorder 1, %s10
    %p134 = scmp.lt.s32.totalorder %s10, 5
    %p135 = pnand %p133, %p134
    %p136 = pneg %p135
    // Predicated region
    $region9: #{withbias_layernorm.1} parent=5 // pred_check
      _
    $region10: #{withbias_layernorm.1} parent=5 // pred_check_branch
      %138 = sbr.rel (%p135) target = $region12
    $region11: #{withbias_layernorm.1} parent=5 // pred_region
      %s139 = ssub.s32 %s10, 1
      // Predicated region
      $region13: #{withbias_layernorm.1} parent=11 // pred_check
        %p140 = pneg %p57
      $region14: #{withbias_layernorm.1} parent=11 // pred_check_branch
        %142 = sbr.rel (%p140) target = $region16
      $region15: #{withbias_layernorm.1} parent=11 // pred_region
        _
      $region16: #{withbias_layernorm.1} parent=11 // pred_fallthru
        _
      // Predicated region
      $region17: #{withbias_layernorm.1} parent=11 // pred_check
        %p143 = pneg %p78
      $region18: #{withbias_layernorm.1} parent=11 // pred_check_branch
        %145 = sbr.rel (%p143) target = $region20
      $region19: #{withbias_layernorm.1} parent=11 // pred_region
        _
      $region20: #{withbias_layernorm.1} parent=11 // pred_fallthru
        _
      // Predicated region
      $region21: #{withbias_layernorm.1} parent=11 // pred_check
        %p146 = pneg %p99
      $region22: #{withbias_layernorm.1} parent=11 // pred_check_branch
        %148 = sbr.rel (%p146) target = $region24
      $region23: #{withbias_layernorm.1} parent=11 // pred_region
        _
      $region24: #{withbias_layernorm.1} parent=11 // pred_fallthru
        _
    $region12: #{withbias_layernorm.1} parent=5 // pred_fallthru
      _
    %p149 = scmp.lt.s32.totalorder %s10, 4
    // Predicated region
    $region25: #{withbias_layernorm.1} parent=5 // pred_check
      %p150 = pneg %p149
    $region26: #{withbias_layernorm.1} parent=5 // pred_check_branch
      %152 = sbr.rel (%p150) target = $region28
    $region27: #{withbias_layernorm.1} parent=5 // pred_region
      // Predicated region
      $region29: #{withbias_layernorm.1} parent=27 // pred_check
        %p153 = pneg %p30
      $region30: #{withbias_layernorm.1} parent=27 // pred_check_branch
        %155 = sbr.rel (%p153) target = $region32
      $region31: #{withbias_layernorm.1} parent=27 // pred_region
        %p156 = scmp.lt.s32.totalorder %s10, 3
        %s157 = scalar_select %p156, %s10, 3
        %s158 = smul.addr %s157, 8
        %s159 = scalar_lea.vmem %s0, %s158
      $region32: #{withbias_layernorm.1} parent=27 // pred_fallthru
        _
    $region28: #{withbias_layernorm.1} parent=5 // pred_fallthru
      _
    %p160 = scmp.le.s32.totalorder 1, %s10
    %p161 = scmp.lt.s32.totalorder %s10, 5
    %p162 = pnand %p160, %p161
    %p163 = pneg %p162
    // Predicated region
    $region33: #{withbias_layernorm.1} parent=5 // pred_check
      _
    $region34: #{withbias_layernorm.1} parent=5 // pred_check_branch
      %165 = sbr.rel (%p162) target = $region36
    $region35: #{withbias_layernorm.1} parent=5 // pred_region
      %s166 = ssub.s32 %s10, 1
      %p167 = scmp.lt.s32.totalorder %s15, 3
      %s168 = scalar_select %p167, %s15, 3
      %s169 = smul.addr %s168, 8
      %s170 = scalar_lea.vmem %s0, %s169
      %p171 = pneg %p36
      %p172 = pneg %p33
      %p173 = pneg %p57
      %p174 = pneg %p54
      %p175 = pneg %p78
      %p176 = pneg %p75
      %p177 = pneg %p99
      %p178 = pneg %p96
      %p179 = pneg %p125
      %p180 = pneg %p122
      %p181 = scmp.lt.s32.totalorder %s15, 3
      %s182 = scalar_select %p181, %s15, 3
      %s183 = smul.addr %s182, 8
      %s184 = scalar_lea.vmem %s4, %s183
      %p185 = scmp.lt.s32.totalorder %s15, 3
      %s186 = scalar_select %p185, %s15, 3
      %s187 = smul.addr %s186, 8
      %s188 = scalar_lea.vmem %s0, %s187
      %p189 = scmp.lt.s32.totalorder %s15, 3
      %s190 = scalar_select %p189, %s15, 3
      %s191 = smul.addr %s190, 8
      %s192 = scalar_lea.vmem %s4, %s191
      %v193 = vld [vmem:[%s188] sm:$0xff]
      %v194 = vld [vmem:[%s3] sm:$0xff]
      %v195 = vld [vmem:[%s3 + $0x8] sm:$0xff]
      %v196 = vld [vmem:[%s3 + $0x10] sm:$0xff]
      %v197 = vld [vmem:[%s3 + $0x18] sm:$0xff]
      %v198 = vld [vmem:[%s3 + $0x20] sm:$0xff]
      %v199 = vld [vmem:[%s3 + $0x28] sm:$0xff]
      %v200 = vld [vmem:[%s3 + $0x30] sm:$0xff]
      %v201 = vld [vmem:[%s3 + $0x38] sm:$0xff]
      %v202 = vld [vmem:[%s3 + $0x40] sm:$0xff]
      %v203 = vld [vmem:[%s3 + $0x48] sm:$0xff]
      %v204 = vld [vmem:[%s3 + $0x50] sm:$0xff]
      %v205 = vld [vmem:[%s3 + $0x58] sm:$0xff]
      %v206 = vld [vmem:[%s3 + $0x60] sm:$0xff]
      %v207 = vld [vmem:[%s3 + $0x68] sm:$0xff]
      %v208 = vld [vmem:[%s3 + $0x70] sm:$0xff]
      %v209 = vld [vmem:[%s3 + $0x78] sm:$0xff]
      %v210 = vand.u32 %v209, 4294901760
      %211 = vmatpush.msra.mxu0 %v210
      %v212 = vand.u32 %v208, 4294901760
      %213 = vmatpush.msra.mxu0 %v212
      %v214 = vand.u32 %v207, 4294901760
      %215 = vmatpush.msra.mxu0 %v214
      %v216 = vand.u32 %v206, 4294901760
      %217 = vmatpush.msra.mxu0 %v216
      %v218 = vand.u32 %v205, 4294901760
      %219 = vmatpush.msra.mxu0 %v218
      %v220 = vand.u32 %v204, 4294901760
      %221 = vmatpush.msra.mxu0 %v220
      %v222 = vand.u32 %v203, 4294901760
      %223 = vmatpush.msra.mxu0 %v222
      %v224 = vand.u32 %v202, 4294901760
      %225 = vmatpush.msra.mxu0 %v224
      %v226 = vand.u32 %v201, 4294901760
      %227 = vmatpush.msra.mxu0 %v226
      %v228 = vand.u32 %v200, 4294901760
      %229 = vmatpush.msra.mxu0 %v228
      %v230 = vand.u32 %v199, 4294901760
      %231 = vmatpush.msra.mxu0 %v230
      %v232 = vand.u32 %v198, 4294901760
      %233 = vmatpush.msra.mxu0 %v232
      %v234 = vand.u32 %v197, 4294901760
      %235 = vmatpush.msra.mxu0 %v234
      %v236 = vand.u32 %v196, 4294901760
      %237 = vmatpush.msra.mxu0 %v236
      %v238 = vand.u32 %v195, 4294901760
      %239 = vmatpush.msra.mxu0 %v238
      %v240 = vand.u32 %v194, 4294901760
      %241 = vmatpush.msra.mxu0 %v240
      %v242 = vand.u32 %v193, 4294901760
      %v243 = vsub.f32 %v193, %v242
      %v244 = vand.u32 %v243, 4294901760
      %v245 = vsub.f32 %v243, %v244
      %v246 = vand.u32 %v245, 4294901760
      %247 = vmatmul.f32.gmra.mxu0 %v246
      %v248 = vpop.f32.mrf.mxu0
      %v249 = vadd.f32 0.0, %v248
      %250 = vdwg.mxu0
      %v251 = vand.u32 %v209, 4294901760
      %v252 = vsub.f32 %v209, %v251
      %v253 = vand.u32 %v252, 4294901760
      %v254 = vsub.f32 %v252, %v253
      %v255 = vand.u32 %v254, 4294901760
      %256 = vmatpush.msra.mxu0 %v255
      %v257 = vand.u32 %v208, 4294901760
      %v258 = vsub.f32 %v208, %v257
      %v259 = vand.u32 %v258, 4294901760
      %v260 = vsub.f32 %v258, %v259
      %v261 = vand.u32 %v260, 4294901760
      %262 = vmatpush.msra.mxu0 %v261
      %v263 = vand.u32 %v207, 4294901760
      %v264 = vsub.f32 %v207, %v263
      %v265 = vand.u32 %v264, 4294901760
      %v266 = vsub.f32 %v264, %v265
      %v267 = vand.u32 %v266, 4294901760
      %268 = vmatpush.msra.mxu0 %v267
      %v269 = vand.u32 %v206, 4294901760
      %v270 = vsub.f32 %v206, %v269
      %v271 = vand.u32 %v270, 4294901760
      %v272 = vsub.f32 %v270, %v271
      %v273 = vand.u32 %v272, 4294901760
      %274 = vmatpush.msra.mxu0 %v273
      %v275 = vand.u32 %v205, 4294901760
      %v276 = vsub.f32 %v205, %v275
      %v277 = vand.u32 %v276, 4294901760
      %v278 = vsub.f32 %v276, %v277
      %v279 = vand.u32 %v278, 4294901760
      %280 = vmatpush.msra.mxu0 %v279
      %v281 = vand.u32 %v204, 4294901760
      %v282 = vsub.f32 %v204, %v281
      %v283 = vand.u32 %v282, 4294901760
      %v284 = vsub.f32 %v282, %v283
      %v285 = vand.u32 %v284, 4294901760
      %286 = vmatpush.msra.mxu0 %v285
      %v287 = vand.u32 %v203, 4294901760
      %v288 = vsub.f32 %v203, %v287
      %v289 = vand.u32 %v288, 4294901760
      %v290 = vsub.f32 %v288, %v289
      %v291 = vand.u32 %v290, 4294901760
      %292 = vmatpush.msra.mxu0 %v291
      %v293 = vand.u32 %v202, 4294901760
      %v294 = vsub.f32 %v202, %v293
      %v295 = vand.u32 %v294, 4294901760
      %v296 = vsub.f32 %v294, %v295
      %v297 = vand.u32 %v296, 4294901760
      %298 = vmatpush.msra.mxu0 %v297
      %v299 = vand.u32 %v201, 4294901760
      %v300 = vsub.f32 %v201, %v299
      %v301 = vand.u32 %v300, 4294901760
      %v302 = vsub.f32 %v300, %v301
      %v303 = vand.u32 %v302, 4294901760
      %304 = vmatpush.msra.mxu0 %v303
      %v305 = vand.u32 %v200, 4294901760
      %v306 = vsub.f32 %v200, %v305
      %v307 = vand.u32 %v306, 4294901760
      %v308 = vsub.f32 %v306, %v307
      %v309 = vand.u32 %v308, 4294901760
      %310 = vmatpush.msra.mxu0 %v309
      %v311 = vand.u32 %v199, 4294901760
      %v312 = vsub.f32 %v199, %v311
      %v313 = vand.u32 %v312, 4294901760
      %v314 = vsub.f32 %v312, %v313
      %v315 = vand.u32 %v314, 4294901760
      %316 = vmatpush.msra.mxu0 %v315
      %v317 = vand.u32 %v198, 4294901760
      %v318 = vsub.f32 %v198, %v317
      %v319 = vand.u32 %v318, 4294901760
      %v320 = vsub.f32 %v318, %v319
      %v321 = vand.u32 %v320, 4294901760
      %322 = vmatpush.msra.mxu0 %v321
      %v323 = vand.u32 %v197, 4294901760
      %v324 = vsub.f32 %v197, %v323
      %v325 = vand.u32 %v324, 4294901760
      %v326 = vsub.f32 %v324, %v325
      %v327 = vand.u32 %v326, 4294901760
      %328 = vmatpush.msra.mxu0 %v327
      %v329 = vand.u32 %v196, 4294901760
      %v330 = vsub.f32 %v196, %v329
      %v331 = vand.u32 %v330, 4294901760
      %v332 = vsub.f32 %v330, %v331
      %v333 = vand.u32 %v332, 4294901760
      %334 = vmatpush.msra.mxu0 %v333
      %v335 = vand.u32 %v195, 4294901760
      %v336 = vsub.f32 %v195, %v335
      %v337 = vand.u32 %v336, 4294901760
      %v338 = vsub.f32 %v336, %v337
      %v339 = vand.u32 %v338, 4294901760
      %340 = vmatpush.msra.mxu0 %v339
      %v341 = vand.u32 %v194, 4294901760
      %v342 = vsub.f32 %v194, %v341
      %v343 = vand.u32 %v342, 4294901760
      %v344 = vsub.f32 %v342, %v343
      %v345 = vand.u32 %v344, 4294901760
      %346 = vmatpush.msra.mxu0 %v345
      %v347 = vand.u32 %v193, 4294901760
      %348 = vmatmul.f32.gmra.mxu0 %v347
      %v349 = vpop.f32.mrf.mxu0
      %v350 = vadd.f32 %v249, %v349
      %351 = vdwg.mxu0
      %v352 = vand.u32 %v209, 4294901760
      %v353 = vsub.f32 %v209, %v352
      %354 = vmatpush.msra.mxu0 %v353
      %v355 = vand.u32 %v208, 4294901760
      %v356 = vsub.f32 %v208, %v355
      %357 = vmatpush.msra.mxu0 %v356
      %v358 = vand.u32 %v207, 4294901760
      %v359 = vsub.f32 %v207, %v358
      %360 = vmatpush.msra.mxu0 %v359
      %v361 = vand.u32 %v206, 4294901760
      %v362 = vsub.f32 %v206, %v361
      %363 = vmatpush.msra.mxu0 %v362
      %v364 = vand.u32 %v205, 4294901760
      %v365 = vsub.f32 %v205, %v364
      %366 = vmatpush.msra.mxu0 %v365
      %v367 = vand.u32 %v204, 4294901760
      %v368 = vsub.f32 %v204, %v367
      %369 = vmatpush.msra.mxu0 %v368
      %v370 = vand.u32 %v203, 4294901760
      %v371 = vsub.f32 %v203, %v370
      %372 = vmatpush.msra.mxu0 %v371
      %v373 = vand.u32 %v202, 4294901760
      %v374 = vsub.f32 %v202, %v373
      %375 = vmatpush.msra.mxu0 %v374
      %v376 = vand.u32 %v201, 4294901760
      %v377 = vsub.f32 %v201, %v376
      %378 = vmatpush.msra.mxu0 %v377
      %v379 = vand.u32 %v200, 4294901760
      %v380 = vsub.f32 %v200, %v379
      %381 = vmatpush.msra.mxu0 %v380
      %v382 = vand.u32 %v199, 4294901760
      %v383 = vsub.f32 %v199, %v382
      %384 = vmatpush.msra.mxu0 %v383
      %v385 = vand.u32 %v198, 4294901760
      %v386 = vsub.f32 %v198, %v385
      %387 = vmatpush.msra.mxu0 %v386
      %v388 = vand.u32 %v197, 4294901760
      %v389 = vsub.f32 %v197, %v388
      %390 = vmatpush.msra.mxu0 %v389
      %v391 = vand.u32 %v196, 4294901760
      %v392 = vsub.f32 %v196, %v391
      %393 = vmatpush.msra.mxu0 %v392
      %v394 = vand.u32 %v195, 4294901760
      %v395 = vsub.f32 %v195, %v394
      %396 = vmatpush.msra.mxu0 %v395
      %v397 = vand.u32 %v194, 4294901760
      %v398 = vsub.f32 %v194, %v397
      %399 = vmatpush.msra.mxu0 %v398
      %v400 = vand.u32 %v193, 4294901760
      %v401 = vsub.f32 %v193, %v400
      %402 = vmatmul.f32.gmra.mxu0 %v401
      %v403 = vpop.f32.mrf.mxu0
      %v404 = vadd.f32 %v350, %v403
      %405 = vdwg.mxu0
      %v406 = vand.u32 %v209, 4294901760
      %407 = vmatpush.msra.mxu0 %v406
      %v408 = vand.u32 %v208, 4294901760
      %409 = vmatpush.msra.mxu0 %v408
      %v410 = vand.u32 %v207, 4294901760
      %411 = vmatpush.msra.mxu0 %v410
      %v412 = vand.u32 %v206, 4294901760
      %413 = vmatpush.msra.mxu0 %v412
      %v414 = vand.u32 %v205, 4294901760
      %415 = vmatpush.msra.mxu0 %v414
      %v416 = vand.u32 %v204, 4294901760
      %417 = vmatpush.msra.mxu0 %v416
      %v418 = vand.u32 %v203, 4294901760
      %419 = vmatpush.msra.mxu0 %v418
      %v420 = vand.u32 %v202, 4294901760
      %421 = vmatpush.msra.mxu0 %v420
      %v422 = vand.u32 %v201, 4294901760
      %423 = vmatpush.msra.mxu0 %v422
      %v424 = vand.u32 %v200, 4294901760
      %425 = vmatpush.msra.mxu0 %v424
      %v426 = vand.u32 %v199, 4294901760
      %427 = vmatpush.msra.mxu0 %v426
      %v428 = vand.u32 %v198, 4294901760
      %429 = vmatpush.msra.mxu0 %v428
      %v430 = vand.u32 %v197, 4294901760
      %431 = vmatpush.msra.mxu0 %v430
      %v432 = vand.u32 %v196, 4294901760
      %433 = vmatpush.msra.mxu0 %v432
      %v434 = vand.u32 %v195, 4294901760
      %435 = vmatpush.msra.mxu0 %v434
      %v436 = vand.u32 %v194, 4294901760
      %437 = vmatpush.msra.mxu0 %v436
      %v438 = vand.u32 %v193, 4294901760
      %v439 = vsub.f32 %v193, %v438
      %v440 = vand.u32 %v439, 4294901760
      %441 = vmatmul.f32.gmra.mxu0 %v440
      %v442 = vpop.f32.mrf.mxu0
      %v443 = vadd.f32 %v404, %v442
      %444 = vdwg.mxu0
      %v445 = vand.u32 %v209, 4294901760
      %v446 = vsub.f32 %v209, %v445
      %v447 = vand.u32 %v446, 4294901760
      %448 = vmatpush.msra.mxu0 %v447
      %v449 = vand.u32 %v208, 4294901760
      %v450 = vsub.f32 %v208, %v449
      %v451 = vand.u32 %v450, 4294901760
      %452 = vmatpush.msra.mxu0 %v451
      %v453 = vand.u32 %v207, 4294901760
      %v454 = vsub.f32 %v207, %v453
      %v455 = vand.u32 %v454, 4294901760
      %456 = vmatpush.msra.mxu0 %v455
      %v457 = vand.u32 %v206, 4294901760
      %v458 = vsub.f32 %v206, %v457
      %v459 = vand.u32 %v458, 4294901760
      %460 = vmatpush.msra.mxu0 %v459
      %v461 = vand.u32 %v205, 4294901760
      %v462 = vsub.f32 %v205, %v461
      %v463 = vand.u32 %v462, 4294901760
      %464 = vmatpush.msra.mxu0 %v463
      %v465 = vand.u32 %v204, 4294901760
      %v466 = vsub.f32 %v204, %v465
      %v467 = vand.u32 %v466, 4294901760
      %468 = vmatpush.msra.mxu0 %v467
      %v469 = vand.u32 %v203, 4294901760
      %v470 = vsub.f32 %v203, %v469
      %v471 = vand.u32 %v470, 4294901760
      %472 = vmatpush.msra.mxu0 %v471
      %v473 = vand.u32 %v202, 4294901760
      %v474 = vsub.f32 %v202, %v473
      %v475 = vand.u32 %v474, 4294901760
      %476 = vmatpush.msra.mxu0 %v475
      %v477 = vand.u32 %v201, 4294901760
      %v478 = vsub.f32 %v201, %v477
      %v479 = vand.u32 %v478, 4294901760
      %480 = vmatpush.msra.mxu0 %v479
      %v481 = vand.u32 %v200, 4294901760
      %v482 = vsub.f32 %v200, %v481
      %v483 = vand.u32 %v482, 4294901760
      %484 = vmatpush.msra.mxu0 %v483
      %v485 = vand.u32 %v199, 4294901760
      %v486 = vsub.f32 %v199, %v485
      %v487 = vand.u32 %v486, 4294901760
      %488 = vmatpush.msra.mxu0 %v487
      %v489 = vand.u32 %v198, 4294901760
      %v490 = vsub.f32 %v198, %v489
      %v491 = vand.u32 %v490, 4294901760
      %492 = vmatpush.msra.mxu0 %v491
      %v493 = vand.u32 %v197, 4294901760
      %v494 = vsub.f32 %v197, %v493
      %v495 = vand.u32 %v494, 4294901760
      %496 = vmatpush.msra.mxu0 %v495
      %v497 = vand.u32 %v196, 4294901760
      %v498 = vsub.f32 %v196, %v497
      %v499 = vand.u32 %v498, 4294901760
      %500 = vmatpush.msra.mxu0 %v499
      %v501 = vand.u32 %v195, 4294901760
      %v502 = vsub.f32 %v195, %v501
      %v503 = vand.u32 %v502, 4294901760
      %504 = vmatpush.msra.mxu0 %v503
      %v505 = vand.u32 %v194, 4294901760
      %v506 = vsub.f32 %v194, %v505
      %v507 = vand.u32 %v506, 4294901760
      %508 = vmatpush.msra.mxu0 %v507
      %v509 = vand.u32 %v193, 4294901760
      %510 = vmatmul.f32.gmra.mxu0 %v509
      %v511 = vpop.f32.mrf.mxu0
      %v512 = vadd.f32 %v443, %v511
      %513 = vdwg.mxu0
      %v514 = vand.u32 %v209, 4294901760
      %515 = vmatpush.msra.mxu0 %v514
      %v516 = vand.u32 %v208, 4294901760
      %517 = vmatpush.msra.mxu0 %v516
      %v518 = vand.u32 %v207, 4294901760
      %519 = vmatpush.msra.mxu0 %v518
      %v520 = vand.u32 %v206, 4294901760
      %521 = vmatpush.msra.mxu0 %v520
      %v522 = vand.u32 %v205, 4294901760
      %523 = vmatpush.msra.mxu0 %v522
      %v524 = vand.u32 %v204, 4294901760
      %525 = vmatpush.msra.mxu0 %v524
      %v526 = vand.u32 %v203, 4294901760
      %527 = vmatpush.msra.mxu0 %v526
      %v528 = vand.u32 %v202, 4294901760
      %529 = vmatpush.msra.mxu0 %v528
      %v530 = vand.u32 %v201, 4294901760
      %531 = vmatpush.msra.mxu0 %v530
      %v532 = vand.u32 %v200, 4294901760
      %533 = vmatpush.msra.mxu0 %v532
      %v534 = vand.u32 %v199, 4294901760
      %535 = vmatpush.msra.mxu0 %v534
      %v536 = vand.u32 %v198, 4294901760
      %537 = vmatpush.msra.mxu0 %v536
      %v538 = vand.u32 %v197, 4294901760
      %539 = vmatpush.msra.mxu0 %v538
      %v540 = vand.u32 %v196, 4294901760
      %541 = vmatpush.msra.mxu0 %v540
      %v542 = vand.u32 %v195, 4294901760
      %543 = vmatpush.msra.mxu0 %v542
      %v544 = vand.u32 %v194, 4294901760
      %545 = vmatpush.msra.mxu0 %v544
      %v546 = vand.u32 %v193, 4294901760
      %547 = vmatmul.f32.gmra.mxu0 %v546
      %v548 = vpop.f32.mrf.mxu0
      %v549 = vadd.f32 %v512, %v548
      %550 = vdwg.mxu0
      %v551 = vmul.f32 %v549, 0.03125
      %v552 = vsub.f32 %v193, %v551
      %v553 = vmul.f32 %v552, %v552
      %v554 = vand.u32 %v209, 4294901760
      %555 = vmatpush.msra.mxu0 %v554
      %v556 = vand.u32 %v208, 4294901760
      %557 = vmatpush.msra.mxu0 %v556
      %v558 = vand.u32 %v207, 4294901760
      %559 = vmatpush.msra.mxu0 %v558
      %v560 = vand.u32 %v206, 4294901760
      %561 = vmatpush.msra.mxu0 %v560
      %v562 = vand.u32 %v205, 4294901760
      %563 = vmatpush.msra.mxu0 %v562
      %v564 = vand.u32 %v204, 4294901760
      %565 = vmatpush.msra.mxu0 %v564
      %v566 = vand.u32 %v203, 4294901760
      %567 = vmatpush.msra.mxu0 %v566
      %v568 = vand.u32 %v202, 4294901760
      %569 = vmatpush.msra.mxu0 %v568
      %v570 = vand.u32 %v201, 4294901760
      %571 = vmatpush.msra.mxu0 %v570
      %v572 = vand.u32 %v200, 4294901760
      %573 = vmatpush.msra.mxu0 %v572
      %v574 = vand.u32 %v199, 4294901760
      %575 = vmatpush.msra.mxu0 %v574
      %v576 = vand.u32 %v198, 4294901760
      %577 = vmatpush.msra.mxu0 %v576
      %v578 = vand.u32 %v197, 4294901760
      %579 = vmatpush.msra.mxu0 %v578
      %v580 = vand.u32 %v196, 4294901760
      %581 = vmatpush.msra.mxu0 %v580
      %v582 = vand.u32 %v195, 4294901760
      %583 = vmatpush.msra.mxu0 %v582
      %v584 = vand.u32 %v194, 4294901760
      %585 = vmatpush.msra.mxu0 %v584
      %v586 = vand.u32 %v553, 4294901760
      %v587 = vsub.f32 %v553, %v586
      %v588 = vand.u32 %v587, 4294901760
      %v589 = vsub.f32 %v587, %v588
      %v590 = vand.u32 %v589, 4294901760
      %591 = vmatmul.f32.gmra.mxu0 %v590
      %v592 = vpop.f32.mrf.mxu0
      %v593 = vadd.f32 0.0, %v592
      %594 = vdwg.mxu0
      %v595 = vand.u32 %v209, 4294901760
      %v596 = vsub.f32 %v209, %v595
      %v597 = vand.u32 %v596, 4294901760
      %v598 = vsub.f32 %v596, %v597
      %v599 = vand.u32 %v598, 4294901760
      %600 = vmatpush.msra.mxu0 %v599
      %v601 = vand.u32 %v208, 4294901760
      %v602 = vsub.f32 %v208, %v601
      %v603 = vand.u32 %v602, 4294901760
      %v604 = vsub.f32 %v602, %v603
      %v605 = vand.u32 %v604, 4294901760
      %606 = vmatpush.msra.mxu0 %v605
      %v607 = vand.u32 %v207, 4294901760
      %v608 = vsub.f32 %v207, %v607
      %v609 = vand.u32 %v608, 4294901760
      %v610 = vsub.f32 %v608, %v609
      %v611 = vand.u32 %v610, 4294901760
      %612 = vmatpush.msra.mxu0 %v611
      %v613 = vand.u32 %v206, 4294901760
      %v614 = vsub.f32 %v206, %v613
      %v615 = vand.u32 %v614, 4294901760
      %v616 = vsub.f32 %v614, %v615
      %v617 = vand.u32 %v616, 4294901760
      %618 = vmatpush.msra.mxu0 %v617
      %v619 = vand.u32 %v205, 4294901760
      %v620 = vsub.f32 %v205, %v619
      %v621 = vand.u32 %v620, 4294901760
      %v622 = vsub.f32 %v620, %v621
      %v623 = vand.u32 %v622, 4294901760
      %624 = vmatpush.msra.mxu0 %v623
      %v625 = vand.u32 %v204, 4294901760
      %v626 = vsub.f32 %v204, %v625
      %v627 = vand.u32 %v626, 4294901760
      %v628 = vsub.f32 %v626, %v627
      %v629 = vand.u32 %v628, 4294901760
      %630 = vmatpush.msra.mxu0 %v629
      %v631 = vand.u32 %v203, 4294901760
      %v632 = vsub.f32 %v203, %v631
      %v633 = vand.u32 %v632, 4294901760
      %v634 = vsub.f32 %v632, %v633
      %v635 = vand.u32 %v634, 4294901760
      %636 = vmatpush.msra.mxu0 %v635
      %v637 = vand.u32 %v202, 4294901760
      %v638 = vsub.f32 %v202, %v637
      %v639 = vand.u32 %v638, 4294901760
      %v640 = vsub.f32 %v638, %v639
      %v641 = vand.u32 %v640, 4294901760
      %642 = vmatpush.msra.mxu0 %v641
      %v643 = vand.u32 %v201, 4294901760
      %v644 = vsub.f32 %v201, %v643
      %v645 = vand.u32 %v644, 4294901760
      %v646 = vsub.f32 %v644, %v645
      %v647 = vand.u32 %v646, 4294901760
      %648 = vmatpush.msra.mxu0 %v647
      %v649 = vand.u32 %v200, 4294901760
      %v650 = vsub.f32 %v200, %v649
      %v651 = vand.u32 %v650, 4294901760
      %v652 = vsub.f32 %v650, %v651
      %v653 = vand.u32 %v652, 4294901760
      %654 = vmatpush.msra.mxu0 %v653
      %v655 = vand.u32 %v199, 4294901760
      %v656 = vsub.f32 %v199, %v655
      %v657 = vand.u32 %v656, 4294901760
      %v658 = vsub.f32 %v656, %v657
      %v659 = vand.u32 %v658, 4294901760
      %660 = vmatpush.msra.mxu0 %v659
      %v661 = vand.u32 %v198, 4294901760
      %v662 = vsub.f32 %v198, %v661
      %v663 = vand.u32 %v662, 4294901760
      %v664 = vsub.f32 %v662, %v663
      %v665 = vand.u32 %v664, 4294901760
      %666 = vmatpush.msra.mxu0 %v665
      %v667 = vand.u32 %v197, 4294901760
      %v668 = vsub.f32 %v197, %v667
      %v669 = vand.u32 %v668, 4294901760
      %v670 = vsub.f32 %v668, %v669
      %v671 = vand.u32 %v670, 4294901760
      %672 = vmatpush.msra.mxu0 %v671
      %v673 = vand.u32 %v196, 4294901760
      %v674 = vsub.f32 %v196, %v673
      %v675 = vand.u32 %v674, 4294901760
      %v676 = vsub.f32 %v674, %v675
      %v677 = vand.u32 %v676, 4294901760
      %678 = vmatpush.msra.mxu0 %v677
      %v679 = vand.u32 %v195, 4294901760
      %v680 = vsub.f32 %v195, %v679
      %v681 = vand.u32 %v680, 4294901760
      %v682 = vsub.f32 %v680, %v681
      %v683 = vand.u32 %v682, 4294901760
      %684 = vmatpush.msra.mxu0 %v683
      %v685 = vand.u32 %v194, 4294901760
      %v686 = vsub.f32 %v194, %v685
      %v687 = vand.u32 %v686, 4294901760
      %v688 = vsub.f32 %v686, %v687
      %v689 = vand.u32 %v688, 4294901760
      %690 = vmatpush.msra.mxu0 %v689
      %v691 = vand.u32 %v553, 4294901760
      %692 = vmatmul.f32.gmra.mxu0 %v691
      %v693 = vpop.f32.mrf.mxu0
      %v694 = vadd.f32 %v593, %v693
      %695 = vdwg.mxu0
      %v696 = vand.u32 %v209, 4294901760
      %v697 = vsub.f32 %v209, %v696
      %698 = vmatpush.msra.mxu0 %v697
      %v699 = vand.u32 %v208, 4294901760
      %v700 = vsub.f32 %v208, %v699
      %701 = vmatpush.msra.mxu0 %v700
      %v702 = vand.u32 %v207, 4294901760
      %v703 = vsub.f32 %v207, %v702
      %704 = vmatpush.msra.mxu0 %v703
      %v705 = vand.u32 %v206, 4294901760
      %v706 = vsub.f32 %v206, %v705
      %707 = vmatpush.msra.mxu0 %v706
      %v708 = vand.u32 %v205, 4294901760
      %v709 = vsub.f32 %v205, %v708
      %710 = vmatpush.msra.mxu0 %v709
      %v711 = vand.u32 %v204, 4294901760
      %v712 = vsub.f32 %v204, %v711
      %713 = vmatpush.msra.mxu0 %v712
      %v714 = vand.u32 %v203, 4294901760
      %v715 = vsub.f32 %v203, %v714
      %716 = vmatpush.msra.mxu0 %v715
      %v717 = vand.u32 %v202, 4294901760
      %v718 = vsub.f32 %v202, %v717
      %719 = vmatpush.msra.mxu0 %v718
      %v720 = vand.u32 %v201, 4294901760
      %v721 = vsub.f32 %v201, %v720
      %722 = vmatpush.msra.mxu0 %v721
      %v723 = vand.u32 %v200, 4294901760
      %v724 = vsub.f32 %v200, %v723
      %725 = vmatpush.msra.mxu0 %v724
      %v726 = vand.u32 %v199, 4294901760
      %v727 = vsub.f32 %v199, %v726
      %728 = vmatpush.msra.mxu0 %v727
      %v729 = vand.u32 %v198, 4294901760
      %v730 = vsub.f32 %v198, %v729
      %731 = vmatpush.msra.mxu0 %v730
      %v732 = vand.u32 %v197, 4294901760
      %v733 = vsub.f32 %v197, %v732
      %734 = vmatpush.msra.mxu0 %v733
      %v735 = vand.u32 %v196, 4294901760
      %v736 = vsub.f32 %v196, %v735
      %737 = vmatpush.msra.mxu0 %v736
      %v738 = vand.u32 %v195, 4294901760
      %v739 = vsub.f32 %v195, %v738
      %740 = vmatpush.msra.mxu0 %v739
      %v741 = vand.u32 %v194, 4294901760
      %v742 = vsub.f32 %v194, %v741
      %743 = vmatpush.msra.mxu0 %v742
      %v744 = vand.u32 %v553, 4294901760
      %v745 = vsub.f32 %v553, %v744
      %746 = vmatmul.f32.gmra.mxu0 %v745
      %v747 = vpop.f32.mrf.mxu0
      %v748 = vadd.f32 %v694, %v747
      %749 = vdwg.mxu0
      %v750 = vand.u32 %v209, 4294901760
      %751 = vmatpush.msra.mxu0 %v750
      %v752 = vand.u32 %v208, 4294901760
      %753 = vmatpush.msra.mxu0 %v752
      %v754 = vand.u32 %v207, 4294901760
      %755 = vmatpush.msra.mxu0 %v754
      %v756 = vand.u32 %v206, 4294901760
      %757 = vmatpush.msra.mxu0 %v756
      %v758 = vand.u32 %v205, 4294901760
      %759 = vmatpush.msra.mxu0 %v758
      %v760 = vand.u32 %v204, 4294901760
      %761 = vmatpush.msra.mxu0 %v760
      %v762 = vand.u32 %v203, 4294901760
      %763 = vmatpush.msra.mxu0 %v762
      %v764 = vand.u32 %v202, 4294901760
      %765 = vmatpush.msra.mxu0 %v764
      %v766 = vand.u32 %v201, 4294901760
      %767 = vmatpush.msra.mxu0 %v766
      %v768 = vand.u32 %v200, 4294901760
      %769 = vmatpush.msra.mxu0 %v768
      %v770 = vand.u32 %v199, 4294901760
      %771 = vmatpush.msra.mxu0 %v770
      %v772 = vand.u32 %v198, 4294901760
      %773 = vmatpush.msra.mxu0 %v772
      %v774 = vand.u32 %v197, 4294901760
      %775 = vmatpush.msra.mxu0 %v774
      %v776 = vand.u32 %v196, 4294901760
      %777 = vmatpush.msra.mxu0 %v776
      %v778 = vand.u32 %v195, 4294901760
      %779 = vmatpush.msra.mxu0 %v778
      %v780 = vand.u32 %v194, 4294901760
      %781 = vmatpush.msra.mxu0 %v780
      %v782 = vand.u32 %v553, 4294901760
      %v783 = vsub.f32 %v553, %v782
      %v784 = vand.u32 %v783, 4294901760
      %785 = vmatmul.f32.gmra.mxu0 %v784
      %v786 = vpop.f32.mrf.mxu0
      %v787 = vadd.f32 %v748, %v786
      %788 = vdwg.mxu0
      %v789 = vand.u32 %v209, 4294901760
      %v790 = vsub.f32 %v209, %v789
      %v791 = vand.u32 %v790, 4294901760
      %792 = vmatpush.msra.mxu0 %v791
      %v793 = vand.u32 %v208, 4294901760
      %v794 = vsub.f32 %v208, %v793
      %v795 = vand.u32 %v794, 4294901760
      %796 = vmatpush.msra.mxu0 %v795
      %v797 = vand.u32 %v207, 4294901760
      %v798 = vsub.f32 %v207, %v797
      %v799 = vand.u32 %v798, 4294901760
      %800 = vmatpush.msra.mxu0 %v799
      %v801 = vand.u32 %v206, 4294901760
      %v802 = vsub.f32 %v206, %v801
      %v803 = vand.u32 %v802, 4294901760
      %804 = vmatpush.msra.mxu0 %v803
      %v805 = vand.u32 %v205, 4294901760
      %v806 = vsub.f32 %v205, %v805
      %v807 = vand.u32 %v806, 4294901760
      %808 = vmatpush.msra.mxu0 %v807
      %v809 = vand.u32 %v204, 4294901760
      %v810 = vsub.f32 %v204, %v809
      %v811 = vand.u32 %v810, 4294901760
      %812 = vmatpush.msra.mxu0 %v811
      %v813 = vand.u32 %v203, 4294901760
      %v814 = vsub.f32 %v203, %v813
      %v815 = vand.u32 %v814, 4294901760
      %816 = vmatpush.msra.mxu0 %v815
      %v817 = vand.u32 %v202, 4294901760
      %v818 = vsub.f32 %v202, %v817
      %v819 = vand.u32 %v818, 4294901760
      %820 = vmatpush.msra.mxu0 %v819
      %v821 = vand.u32 %v201, 4294901760
      %v822 = vsub.f32 %v201, %v821
      %v823 = vand.u32 %v822, 4294901760
      %824 = vmatpush.msra.mxu0 %v823
      %v825 = vand.u32 %v200, 4294901760
      %v826 = vsub.f32 %v200, %v825
      %v827 = vand.u32 %v826, 4294901760
      %828 = vmatpush.msra.mxu0 %v827
      %v829 = vand.u32 %v199, 4294901760
      %v830 = vsub.f32 %v199, %v829
      %v831 = vand.u32 %v830, 4294901760
      %832 = vmatpush.msra.mxu0 %v831
      %v833 = vand.u32 %v198, 4294901760
      %v834 = vsub.f32 %v198, %v833
      %v835 = vand.u32 %v834, 4294901760
      %836 = vmatpush.msra.mxu0 %v835
      %v837 = vand.u32 %v197, 4294901760
      %v838 = vsub.f32 %v197, %v837
      %v839 = vand.u32 %v838, 4294901760
      %840 = vmatpush.msra.mxu0 %v839
      %v841 = vand.u32 %v196, 4294901760
      %v842 = vsub.f32 %v196, %v841
      %v843 = vand.u32 %v842, 4294901760
      %844 = vmatpush.msra.mxu0 %v843
      %v845 = vand.u32 %v195, 4294901760
      %v846 = vsub.f32 %v195, %v845
      %v847 = vand.u32 %v846, 4294901760
      %848 = vmatpush.msra.mxu0 %v847
      %v849 = vand.u32 %v194, 4294901760
      %v850 = vsub.f32 %v194, %v849
      %v851 = vand.u32 %v850, 4294901760
      %852 = vmatpush.msra.mxu0 %v851
      %v853 = vand.u32 %v553, 4294901760
      %854 = vmatmul.f32.gmra.mxu0 %v853
      %v855 = vpop.f32.mrf.mxu0
      %v856 = vadd.f32 %v787, %v855
      %857 = vdwg.mxu0
      %v858 = vand.u32 %v209, 4294901760
      %859 = vmatpush.msra.mxu0 %v858
      %v860 = vand.u32 %v208, 4294901760
      %861 = vmatpush.msra.mxu0 %v860
      %v862 = vand.u32 %v207, 4294901760
      %863 = vmatpush.msra.mxu0 %v862
      %v864 = vand.u32 %v206, 4294901760
      %865 = vmatpush.msra.mxu0 %v864
      %v866 = vand.u32 %v205, 4294901760
      %867 = vmatpush.msra.mxu0 %v866
      %v868 = vand.u32 %v204, 4294901760
      %869 = vmatpush.msra.mxu0 %v868
      %v870 = vand.u32 %v203, 4294901760
      %871 = vmatpush.msra.mxu0 %v870
      %v872 = vand.u32 %v202, 4294901760
      %873 = vmatpush.msra.mxu0 %v872
      %v874 = vand.u32 %v201, 4294901760
      %875 = vmatpush.msra.mxu0 %v874
      %v876 = vand.u32 %v200, 4294901760
      %877 = vmatpush.msra.mxu0 %v876
      %v878 = vand.u32 %v199, 4294901760
      %879 = vmatpush.msra.mxu0 %v878
      %v880 = vand.u32 %v198, 4294901760
      %881 = vmatpush.msra.mxu0 %v880
      %v882 = vand.u32 %v197, 4294901760
      %883 = vmatpush.msra.mxu0 %v882
      %v884 = vand.u32 %v196, 4294901760
      %885 = vmatpush.msra.mxu0 %v884
      %v886 = vand.u32 %v195, 4294901760
      %887 = vmatpush.msra.mxu0 %v886
      %v888 = vand.u32 %v194, 4294901760
      %889 = vmatpush.msra.mxu0 %v888
      %v890 = vand.u32 %v553, 4294901760
      %891 = vmatmul.f32.gmra.mxu0 %v890
      %v892 = vpop.f32.mrf.mxu0
      %v893 = vadd.f32 %v856, %v892
      %894 = vdwg.mxu0
      %v895 = vmul.f32 %v893, 0.03125
      %v896 = vadd.f32 %v895, 1e-05
      %v897 = vrsqrt.pop %v896
      %v898 = vmul.f32 %v897, %v896
      %v899 = vmul.f32 %v898, %v897
      %v900 = vmul.f32 0.5, %v899
      %v901 = vsub.f32 1.5, %v900
      %v902 = vmul.f32 %v897, %v901
      %vm903 = vweird.f32 %v896
      %vm904 = vweird.f32 %v897
      %vm905 = vmor %vm903, %vm904
      %v906 = vsel %vm905, %v897, %v902
      %v907 = vmul.f32 %v552, %v906
      %v908 = vld [vmem:[%s1] sm:$0x1]
      %v910 = vperm.slane %v908, 0
      %v912 = vmul.f32 %v907, %v910
      %v913 = vld [vmem:[%s2] sm:$0x1]
      %v915 = vperm.slane %v913, 0
      %v917 = vadd.f32 %v912, %v915
      %918 = vst [vmem:[%s192] sm:$0xff] %v917
      %p919 = scmp.lt.s32.totalorder %s15, 3
      %s920 = scalar_select %p919, %s15, 3
      %s921 = smul.addr %s920, 8
      %s922 = scalar_lea.vmem %s4, %s921
      // Predicated region
      $region37: #{withbias_layernorm.1} parent=35 // pred_check
        %p923 = pneg %p122
      $region38: #{withbias_layernorm.1} parent=35 // pred_check_branch
        %925 = sbr.rel (%p923) target = $region40
      $region39: #{withbias_layernorm.1} parent=35 // pred_region
        _
      $region40: #{withbias_layernorm.1} parent=35 // pred_fallthru
        _
    $region36: #{withbias_layernorm.1} parent=5 // pred_fallthru
      _
    %p926 = scmp.le.s32.totalorder 2, %s10
    // Predicated region
    $region41: #{withbias_layernorm.1} parent=5 // pred_check
      %p927 = pneg %p926
    $region42: #{withbias_layernorm.1} parent=5 // pred_check_branch
      %929 = sbr.rel (%p927) target = $region44
    $region43: #{withbias_layernorm.1} parent=5 // pred_region
      %s930 = ssub.s32 %s10, 2
      // Predicated region
      $region45: #{withbias_layernorm.1} parent=43 // pred_check
        %p931 = pneg %p128
      $region46: #{withbias_layernorm.1} parent=43 // pred_check_branch
        %933 = sbr.rel (%p931) target = $region48
      $region47: #{withbias_layernorm.1} parent=43 // pred_region
        %p934 = scmp.lt.s32.totalorder %s16, 3
        %s935 = scalar_select %p934, %s16, 3
        %s936 = smul.addr %s935, 8
        %s937 = scalar_lea.vmem %s4, %s936
      $region48: #{withbias_layernorm.1} parent=43 // pred_fallthru
        _
    $region44: #{withbias_layernorm.1} parent=5 // pred_fallthru
      _
  $region6: #{withbias_layernorm.1} parent=0 // loop_footer
    %s14 = sadd.s32 1, %s10
  $region7: #{withbias_layernorm.1} parent=0 // loop_footer_branch
    %9 = sbr.rel target = $region3
  $region8: #{withbias_layernorm.1} parent=0 // loop_exit
    _

</llo_original>
